<compile_context>
chip_gen: v7x
topology: tpu7x:2x2x1
jax: 0.10.0
libtpu: 0.0.40
codegen_flags: <defaults>
</compile_context>

<pallas_src>
import jax
import jax.numpy as jnp
from jax import lax
from jax.experimental import pallas as pl
from jax.experimental.pallas import tpu as pltpu


def waiting_time_kernel(state_ref, rates_ref, u_ref,
                        new_state_ref, dt_ref, action_ref, *times_out):
    """Single ungridded invocation; K Markov steps fused in a fori_loop.

    state_ref : (B, N) f32 occupations in {0, 1}
    rates_ref : (B, N) f32 strictly positive rates
    u_ref     : (K, B, N) f32 uniforms in (0, 1), one slab per step
    outputs   : new_state (B, N), dt (B, K), action (B, K) i32 [, times (K, B, N)]
    """
    K = u_ref.shape[0]
    B, N = rates_ref.shape

    # Hoisted loop invariants (JAX does not CSE broadcasts inside the loop).
    inv_rates = 1.0 / rates_ref[...]                        # exact f32 divide, once per call
    lane_n = lax.broadcasted_iota(jnp.int32, (B, N), 1)     # lattice-site index per lane
    lane_k = lax.broadcasted_iota(jnp.int32, (B, K), 1)     # step index per lane

    def step(k, carry):
        state, dt_acc, act_acc = carry
        u = u_ref[k]                                        # (B, N) uniforms in (0, 1)
        times = -jnp.log(u) * inv_rates                     # Exponential(rate) samples
        dt = jnp.min(times, axis=-1, keepdims=True)         # (B, 1)
        # First argmin (torch.min semantics: lowest index among ties).
        action = jnp.min(jnp.where(times == dt, lane_n, N), axis=-1, keepdims=True)
        # Ising transition, k=1:  y[a] -= 1 ; y[a] *= -1   ==>   y[a] = 1 - y[a]
        state = jnp.where(lane_n == action, 1.0 - state, state)
        # Record this step's dt/action in lane k of the lane-dense (B, K) accumulators.
        dt_acc = jnp.where(lane_k == k, dt, dt_acc)
        act_acc = jnp.where(lane_k == k, action, act_acc)
        for t_ref in times_out:                             # debug/verification only
            t_ref[k] = times
        return state, dt_acc, act_acc

    carry0 = (state_ref[...],
              jnp.zeros((B, K), jnp.float32),
              jnp.zeros((B, K), jnp.int32))
    state_final, dt_acc, act_acc = lax.fori_loop(0, K, step, carry0)

    new_state_ref[...] = state_final.astype(new_state_ref.dtype)
    dt_ref[...] = dt_acc                                    # single unmasked lane-dense store
    action_ref[...] = act_acc


def _waiting_time_impl(state, rates, u, *, return_times=False):
    """One fused call = K chained single-step forwards with fixed `rates`.

    state: (B, L, L) f32 occupations in {0, 1}
    rates: (B, C, L, L) f32 strictly positive (C == 1 for the Ising path)
    u    : (K, B, C*L*L) f32 uniforms in (0, 1); supply a FRESH slab per fused call.

    Returns (new_state (B, L, L), dt (B, K), action (B, K) int32[, times (K, B, N)]).
    K = 1 reproduces the original module forward exactly (dt[:, 0], action[:, 0]).
    """
    B, L, _ = state.shape
    K = u.shape[0]
    state_f = state.reshape(B, L * L).astype(jnp.float32)
    rates_f = rates.reshape(B, -1).astype(jnp.float32)
    N = rates_f.shape[1]
    assert N == L * L, "Ising path expects C == 1 so action indexes the state lattice"
    u_f = u.reshape(K, B, N).astype(jnp.float32)

    vmem = pltpu.MemorySpace.VMEM
    out_shape = [
        jax.ShapeDtypeStruct((B, N), jnp.float32),   # new_state
        jax.ShapeDtypeStruct((B, K), jnp.float32),   # dt     (lane-dense when K % 128 == 0)
        jax.ShapeDtypeStruct((B, K), jnp.int32),     # action (lane-dense when K % 128 == 0)
    ]
    out_specs = [pl.BlockSpec(memory_space=vmem)] * 3
    if return_times:
        out_shape.append(jax.ShapeDtypeStruct((K, B, N), jnp.float32))
        out_specs.append(pl.BlockSpec(memory_space=vmem))

    outs = pl.pallas_call(
        waiting_time_kernel,
        out_shape=tuple(out_shape),
        in_specs=[pl.BlockSpec(memory_space=vmem)] * 3,
        out_specs=tuple(out_specs),
    )(state_f, rates_f, u_f)

    new_state, dt, action = outs[0], outs[1], outs[2]
    result = (new_state.reshape(B, L, L), dt, action)
    if return_times:
        result = result + (outs[3],)
    return result


# One fused dispatch per K Markov steps.
waiting_time = jax.jit(_waiting_time_impl, static_argnames=("return_times",))


if __name__ == "__main__":
    key = jax.random.PRNGKey(0)
    k_state, k_rates, k_u = jax.random.split(key, 3)

    B, C, L, K = 8, 1, 16, 128        # B fills f32 sublanes; K multiple of 128 -> lane-dense
    N = C * L * L

    # Occupation lattice in {0, 1} (Ising in lattice-gas representation, as the flip implies).
    state = jax.random.bernoulli(k_state, 0.5, (B, L, L)).astype(jnp.float32)
    # Strictly positive rates (NCHW layout, C == 1).
    rates = jax.random.uniform(k_rates, (B, C, L, L), jnp.float32, minval=0.1, maxval=2.0)
    # Uniforms strictly inside (0, 1): inverse-CDF inputs, one slab per Markov step.
    u = jax.random.uniform(k_u, (K, B, N), jnp.float32,
                           minval=jnp.float32(2.0 ** -24), maxval=1.0)

    new_state, dt, action, times = waiting_time(state, rates, u, return_times=True)
    jax.block_until_ready((new_state, dt, action, times))

    # ---------------- reference checks -------------------------------------------------
    # (1) the in-kernel exponential samples match -log(u)/rates up to rounding
    rates_flat = rates.reshape(B, N)
    times_ref = -jnp.log(u) / rates_flat[None]
    assert jnp.all(jnp.isfinite(times)), "non-finite exponential samples"
    assert jnp.allclose(times, times_ref, rtol=1e-5, atol=1e-5), "exponential sample mismatch"

    # (2) per-step dt and first-argmin action, recomputed from the kernel's own samples
    dt_ref = jnp.min(times, axis=-1).T                               # (B, K)
    action_ref = jnp.argmin(times, axis=-1).astype(jnp.int32).T      # (B, K)
    assert jnp.array_equal(dt, dt_ref), "dt mismatch"
    assert jnp.array_equal(action, action_ref), "action mismatch"

    # (3) final state: each step flips exactly one site -> parity of per-site flip counts
    flip_counts = jax.nn.one_hot(action_ref, N, dtype=jnp.int32).sum(axis=1)   # (B, N)
    state0 = state.reshape(B, N)
    state_expected = jnp.where(flip_counts % 2 == 1, 1.0 - state0, state0).reshape(B, L, L)
    assert jnp.array_equal(new_state, state_expected), "state mismatch"

    print("KERNEL_OK")
</pallas_src>

<mosaic_0001>
module attributes {stable_mosaic.version = 11 : i64} {
  func.func @waiting_time_kernel(%arg0: memref<8x256xf32, #tpu.memory_space<vmem>>, %arg1: memref<8x256xf32, #tpu.memory_space<vmem>>, %arg2: memref<128x8x256xf32, #tpu.memory_space<vmem>>, %arg3: memref<8x256xf32, #tpu.memory_space<vmem>>, %arg4: memref<8x128xf32, #tpu.memory_space<vmem>>, %arg5: memref<8x128xi32, #tpu.memory_space<vmem>>, %arg6: memref<128x8x256xf32, #tpu.memory_space<vmem>>) attributes {dimension_semantics = [], scalar_prefetch = 0 : i64, scratch_operands = 0 : i64, tpu.core_type = #tpu.core_type<tc>} {
    %c0 = arith.constant 0 : index
    %c0_0 = arith.constant 0 : index
    %0 = vector.load %arg1[%c0, %c0_0] : memref<8x256xf32, #tpu.memory_space<vmem>>, vector<8x256xf32>
    %cst = arith.constant 1.000000e+00 : f32
    %1 = vector.broadcast %cst : f32 to vector<8x256xf32>
    %2 = arith.divf %1, %0 : vector<8x256xf32>
    %3 = tpu.iota {dimensions = array<i32: 1>} : vector<8x256xi32>
    %4 = tpu.iota {dimensions = array<i32: 1>} : vector<8x128xi32>
    %c0_1 = arith.constant 0 : index
    %c0_2 = arith.constant 0 : index
    %5 = vector.load %arg0[%c0_1, %c0_2] : memref<8x256xf32, #tpu.memory_space<vmem>>, vector<8x256xf32>
    %cst_3 = arith.constant 0.000000e+00 : f32
    %6 = vector.broadcast %cst_3 : f32 to vector<8x128xf32>
    %c0_i32 = arith.constant 0 : i32
    %7 = vector.broadcast %c0_i32 : i32 to vector<8x128xi32>
    %c0_i32_4 = arith.constant 0 : i32
    %c128_i32 = arith.constant 128 : i32
    %8 = arith.addi %c0_i32_4, %c128_i32 : i32
    %c1_i32 = arith.constant 1 : i32
    %9:3 = scf.for %arg7 = %c0_i32_4 to %8 step %c1_i32 iter_args(%arg8 = %5, %arg9 = %6, %arg10 = %7) -> (vector<8x256xf32>, vector<8x128xf32>, vector<8x128xi32>)  : i32 {
      %13 = arith.index_cast %arg7 : i32 to index
      %c0_12 = arith.constant 0 : index
      %c0_13 = arith.constant 0 : index
      %14 = vector.load %arg2[%13, %c0_12, %c0_13] : memref<128x8x256xf32, #tpu.memory_space<vmem>>, vector<1x8x256xf32>
      %15 = vector.shape_cast %14 : vector<1x8x256xf32> to vector<8x256xf32>
      %16 = math.log %15 : vector<8x256xf32>
      %cst_14 = arith.constant 0.000000e+00 : f32
      %17 = vector.broadcast %cst_14 : f32 to vector<8x256xf32>
      %18 = arith.subf %17, %16 : vector<8x256xf32>
      %19 = arith.mulf %18, %2 : vector<8x256xf32>
      %cst_15 = arith.constant dense<0x7F800000> : vector<8xf32>
      %20 = vector.multi_reduction <minimumf>, %19, %cst_15 [1] : vector<8x256xf32> to vector<8xf32>
      %21 = vector.shape_cast %20 : vector<8xf32> to vector<8x1xf32>
      %22 = vector.broadcast %21 : vector<8x1xf32> to vector<8x256xf32>
      %23 = arith.cmpf oeq, %19, %22 : vector<8x256xf32>
      %c256_i32 = arith.constant 256 : i32
      %24 = vector.broadcast %c256_i32 : i32 to vector<8x256xi32>
      %25 = arith.select %23, %3, %24 : vector<8x256xi1>, vector<8x256xi32>
      %cst_16 = arith.constant dense<2147483647> : vector<8xi32>
      %26 = vector.multi_reduction <minsi>, %25, %cst_16 [1] : vector<8x256xi32> to vector<8xi32>
      %27 = vector.shape_cast %26 : vector<8xi32> to vector<8x1xi32>
      %28 = vector.broadcast %27 : vector<8x1xi32> to vector<8x256xi32>
      %29 = arith.cmpi eq, %3, %28 : vector<8x256xi32>
      %cst_17 = arith.constant 1.000000e+00 : f32
      %30 = vector.broadcast %cst_17 : f32 to vector<8x256xf32>
      %31 = arith.subf %30, %arg8 : vector<8x256xf32>
      %32 = arith.select %29, %31, %arg8 : vector<8x256xi1>, vector<8x256xf32>
      %33 = vector.broadcast %arg7 : i32 to vector<8x128xi32>
      %34 = arith.cmpi eq, %4, %33 : vector<8x128xi32>
      %35 = vector.shape_cast %21 : vector<8x1xf32> to vector<8x1xf32>
      %36 = vector.broadcast %35 : vector<8x1xf32> to vector<8x128xf32>
      %37 = arith.select %34, %36, %arg9 : vector<8x128xi1>, vector<8x128xf32>
      %38 = vector.broadcast %arg7 : i32 to vector<8x128xi32>
      %39 = arith.cmpi eq, %4, %38 : vector<8x128xi32>
      %40 = vector.shape_cast %27 : vector<8x1xi32> to vector<8x1xi32>
      %41 = vector.broadcast %40 : vector<8x1xi32> to vector<8x128xi32>
      %42 = arith.select %39, %41, %arg10 : vector<8x128xi1>, vector<8x128xi32>
      %43 = arith.index_cast %arg7 : i32 to index
      %c0_18 = arith.constant 0 : index
      %c0_19 = arith.constant 0 : index
      %44 = vector.load %arg6[%43, %c0_18, %c0_19] : memref<128x8x256xf32, #tpu.memory_space<vmem>>, vector<1x8x256xf32>
      %45 = vector.shape_cast %44 : vector<1x8x256xf32> to vector<8x256xf32>
      %46 = vector.shape_cast %19 : vector<8x256xf32> to vector<1x8x256xf32>
      tpu.vector_store %arg6[%43, %c0_18, %c0_19], %46 {strides = array<i32>} : memref<128x8x256xf32, #tpu.memory_space<vmem>>, vector<1x8x256xf32>,
      scf.yield %32, %37, %42 : vector<8x256xf32>, vector<8x128xf32>, vector<8x128xi32>
    }
    %c128_i32_5 = arith.constant 128 : i32
    %c0_6 = arith.constant 0 : index
    %c0_7 = arith.constant 0 : index
    %10 = vector.load %arg3[%c0_6, %c0_7] : memref<8x256xf32, #tpu.memory_space<vmem>>, vector<8x256xf32>
    tpu.vector_store %arg3[%c0_6, %c0_7], %9#0 {strides = array<i32>} : memref<8x256xf32, #tpu.memory_space<vmem>>, vector<8x256xf32>,
    %c0_8 = arith.constant 0 : index
    %c0_9 = arith.constant 0 : index
    %11 = vector.load %arg4[%c0_8, %c0_9] : memref<8x128xf32, #tpu.memory_space<vmem>>, vector<8x128xf32>
    tpu.vector_store %arg4[%c0_8, %c0_9], %9#1 {strides = array<i32>} : memref<8x128xf32, #tpu.memory_space<vmem>>, vector<8x128xf32>,
    %c0_10 = arith.constant 0 : index
    %c0_11 = arith.constant 0 : index
    %12 = vector.load %arg5[%c0_10, %c0_11] : memref<8x128xi32, #tpu.memory_space<vmem>>, vector<8x128xi32>
    tpu.vector_store %arg5[%c0_10, %c0_11], %9#2 {strides = array<i32>} : memref<8x128xi32, #tpu.memory_space<vmem>>, vector<8x128xi32>,
    return
  }
}

</mosaic_0001>

<llo_original>
// kernel: _waiting_time_impl.1
$region0: #{_waiting_time_impl.1}
  #allocation0 [shape = 'u32[]', space=smem, size = 0x4, offset = 0x4, fixed_abs, tag = 'smem constant byte address 0x4 - core index']
  #allocation1 [shape = 'u32[144,128]{1,0:T(1,128)}', space=vmem, size = 0x12000, scoped, tag = 'internal scratch']
  %s0 = inlined_call_operand.vmem [shape: f32[8,256], index: 0, kind: input, shape index: {}]
  %s1 = inlined_call_operand.vmem [shape: f32[8,256], index: 1, kind: input, shape index: {}]
  %s2 = inlined_call_operand.hbm [shape: f32[128,8,256], index: 2, kind: input, shape index: {}]
  %s3 = inlined_call_operand.vmem [shape: f32[8,256], index: 3, kind: output, shape index: {0}]
  %s4 = inlined_call_operand.hbm [shape: f32[8,128], index: 4, kind: output, shape index: {1}]
  %s5 = inlined_call_operand.hbm [shape: s32[8,128], index: 5, kind: output, shape index: {2}]
  %s6 = inlined_call_operand.hbm [shape: f32[128,8,256], index: 6, kind: output, shape index: {3}]
  %7 = xla_tuple %s3, %s4, %s5, %s6
  %s8 = sld [smem:[#allocation0]]
  $region57: #{_waiting_time_impl.1} parent=0
    _
  %s10 = ssub.s32 1, %s8
  %s11 = scalar_select 0, %s10, %s8
  $region1: #{_waiting_time_impl.1} parent=0
    #allocation2 [shape = 'u8[1048576]{0}', space=vmem, size = 0x100000, scoped, tag = 'input window, operand 2, single buffered']
    #allocation3 [shape = 's32[1]{0}', space=sflag, size = 0x4, scoped, tag = 'scoped memory for _waiting_time_impl.1']
    #allocation4 [shape = 's32[1]{0}', space=sflag, size = 0x4, scoped, tag = 'scoped memory for _waiting_time_impl.1']
    #allocation5 [shape = 'u8[4096]{0}', space=vmem, size = 0x1000, scoped, tag = 'output window, operand 1, single buffered']
    #allocation6 [shape = 'u8[4096]{0}', space=vmem, size = 0x1000, scoped, tag = 'output window, operand 2, single buffered']
    #allocation7 [shape = 's32[1]{0}', space=sflag, size = 0x4, scoped, tag = 'scoped memory for _waiting_time_impl.1']
    #allocation8 [shape = 'u8[1048576]{0}', space=vmem, size = 0x100000, scoped, tag = 'output window, operand 3, single buffered']
    %12 = vsyncpa [#allocation3], 0
    %13 = vsyncpa [#allocation4], 0
    %14 = vsyncpa [#allocation7], 0
    // Predicated region
    $region2: #{_waiting_time_impl.1} parent=1 // pred_check
      _
    $region3: #{_waiting_time_impl.1} parent=1 // pred_check_branch
      %16 = sbr.rel (0) target = $region5
    $region4: #{_waiting_time_impl.1} parent=1 // pred_region
      _
    $region5: #{_waiting_time_impl.1} parent=1 // pred_fallthru
      _
    // Predicated region
    $region6: #{_waiting_time_impl.1} parent=1 // pred_check
      _
    $region7: #{_waiting_time_impl.1} parent=1 // pred_check_branch
      %18 = sbr.rel (0) target = $region9
    $region8: #{_waiting_time_impl.1} parent=1 // pred_region
      _
    $region9: #{_waiting_time_impl.1} parent=1 // pred_fallthru
      _
    // Predicated region
    $region10: #{_waiting_time_impl.1} parent=1 // pred_check
      _
    $region11: #{_waiting_time_impl.1} parent=1 // pred_check_branch
      %20 = sbr.rel (0) target = $region13
    $region12: #{_waiting_time_impl.1} parent=1 // pred_region
      %s22 = ssub.s32 32768, 32768
      %23 = vsyncadd [#allocation3], %s22
      %s24 = sshll.u32 [#allocation2], 4
      %s25 = int_to_ptr.vmem [resolvable:$true] %s24
      %30 = dma.hbm_to_vmem [thread:$0]  %s2, 32768, %s25, [#allocation3], 256, 256, 16
    $region13: #{_waiting_time_impl.1} parent=1 // pred_fallthru
      _
    // Predicated region
    $region14: #{_waiting_time_impl.1} parent=1 // pred_check
      _
    $region15: #{_waiting_time_impl.1} parent=1 // pred_check_branch
      %32 = sbr.rel (0) target = $region17
    $region16: #{_waiting_time_impl.1} parent=1 // pred_region
      %33 = dma.done [#allocation3], 32768
    $region17: #{_waiting_time_impl.1} parent=1 // pred_fallthru
      _
    %v34 = vld [vmem:[%s1] sm:$0xff]
    %v35 = vld [vmem:[%s1 + $0x8] sm:$0xff]
    %v36 = vrcp.pop %v34
    %v37 = vmul.f32 1.0, %v36
    %v38 = vrcp.pop %v35
    %v39 = vmul.f32 1.0, %v38
    %v40 = vlaneseq
    %v41 = vand.u32 %v40, 127
    %v42 = vadd.s32 %v41, 128
    %v43 = vld [vmem:[%s0] sm:$0xff]
    %v44 = vld [vmem:[%s0 + $0x8] sm:$0xff]
    loop: start=0, step=1, limit=128
    $region18: #{_waiting_time_impl.1} parent=1 // loop_pre_header
      _
    $region19: #{_waiting_time_impl.1} parent=1 // loop_header
      %s46 = sphi 0, %s50
      %p47 = scmp.ge.s32.totalorder %s46, 128
      %v51 = vphi %v43, %v95
      %v52 = vphi %v44, %v96
      %v53 = vphi 0.0, %v99
      %v54 = vphi 0, %v100
    $region20: #{_waiting_time_impl.1} parent=1 // loop_header_branch
      %49 = sbr.rel (%p47) target = $region24
    $region21: #{_waiting_time_impl.1} parent=1 // loop_body
      %s55 = smul.u32 %s46, 2
      %s56 = smul.addr %s55, 8
      %s57 = scalar_lea.vmem [#allocation2], %s56
      %v58 = vld [vmem:[%s57] sm:$0xff]
      %v59 = vld [vmem:[%s57 + $0x8] sm:$0xff]
      %v60 = vlog2.pop %v58
      %v61 = vmul.f32 %v60, 0.6931472
      %v62 = vlog2.pop %v59
      %v63 = vmul.f32 %v62, 0.6931472
      %v64 = vsub.f32 0.0, %v61
      %v65 = vsub.f32 0.0, %v63
      %v66 = vmul.f32 %v64, %v37
      %v67 = vmul.f32 %v65, %v39
      %v68 = vmin.f32 %v66, %v67
      %69 = vmin.xlane.f32.xlu0 %v68
      %v70 = vpop.xlane.xlu0 %69
      %vm71 = vcmp.eq.f32.partialorder %v66, %v70
      %vm72 = vcmp.eq.f32.partialorder %v67, %v70
      %v73 = vsel %vm71, %v41, 256
      %v74 = vsel %vm72, %v42, 256
      %vm75 = vcmp.lt.s32.totalorder %v73, %v74
      %v76 = vsel %vm75, %v73, %v74
      %v77 = vand.u32 %v76, 65535
      %v78 = vshra.s32 %v76, 16
      %v79 = vcvt.s32.f32 %v77
      %v80 = vcvt.s32.f32 %v78
      %81 = vmin.xlane.f32.xlu0 %v80
      %v82 = vpop.xlane.xlu0 %81
      %vm83 = vcmp.eq.f32.partialorder %v80, %v82
      %v84 = vsel %vm83, %v79, inf
      %85 = vmin.xlane.f32.xlu0 %v84
      %v86 = vpop.xlane.xlu0 %85
      %v87 = vcvt.f32.s32 %v86
      %v88 = vcvt.f32.s32 %v82
      %v89 = vshll.u32 %v88, 16
      %v90 = vadd.s32 %v89, %v87
      %vm91 = vcmp.eq.s32.totalorder %v41, %v90
      %vm92 = vcmp.eq.s32.totalorder %v42, %v90
      %v93 = vsub.f32 1.0, %v51
      %v94 = vsub.f32 1.0, %v52
      %v95 = vsel %vm91, %v93, %v51
      %v96 = vsel %vm92, %v94, %v52
      %v97 = vstv %s46
      %vm98 = vcmp.eq.s32.totalorder %v41, %v97
      %v99 = vsel %vm98, %v70, %v53
      %v100 = vsel %vm98, %v90, %v54
      %s101 = smul.addr %s55, 8
      %s102 = scalar_lea.vmem [#allocation8], %s101
      %103 = vst [vmem:[%s102] sm:$0xff] %v66
      %104 = vst [vmem:[%s102 + $0x8] sm:$0xff] %v67
    $region22: #{_waiting_time_impl.1} parent=1 // loop_footer
      %s50 = sadd.s32 1, %s46
    $region23: #{_waiting_time_impl.1} parent=1 // loop_footer_branch
      %45 = sbr.rel target = $region19
    $region24: #{_waiting_time_impl.1} parent=1 // loop_exit
      _
    %105 = vst [vmem:[%s3] sm:$0xff] %v51
    %106 = vst [vmem:[%s3 + $0x8] sm:$0xff] %v52
    %107 = vst [vmem:[#allocation5] sm:$0xff] %v53
    %108 = vst [vmem:[#allocation6] sm:$0xff] %v54
    // Predicated region
    $region25: #{_waiting_time_impl.1} parent=1 // pred_check
      _
    $region26: #{_waiting_time_impl.1} parent=1 // pred_check_branch
      %110 = sbr.rel (0) target = $region28
    $region27: #{_waiting_time_impl.1} parent=1 // pred_region
      _
    $region28: #{_waiting_time_impl.1} parent=1 // pred_fallthru
      _
    // Predicated region
    $region29: #{_waiting_time_impl.1} parent=1 // pred_check
      _
    $region30: #{_waiting_time_impl.1} parent=1 // pred_check_branch
      %112 = sbr.rel (0) target = $region32
    $region31: #{_waiting_time_impl.1} parent=1 // pred_region
      %s114 = ssub.s32 128, 128
      %115 = vsyncadd [#allocation4], %s114
      %s117 = sshll.u32 [#allocation5], 4
      %s118 = int_to_ptr.vmem [resolvable:$true] %s117
      %120 = dma.vmem_to_hbm [thread:$0]  %s118, 128, %s4, [#allocation4]
    $region32: #{_waiting_time_impl.1} parent=1 // pred_fallthru
      _
    // Predicated region
    $region33: #{_waiting_time_impl.1} parent=1 // pred_check
      _
    $region34: #{_waiting_time_impl.1} parent=1 // pred_check_branch
      %122 = sbr.rel (0) target = $region36
    $region35: #{_waiting_time_impl.1} parent=1 // pred_region
      %s124 = ssub.s32 128, 128
      %125 = vsyncadd [#allocation7], %s124
      %s127 = sshll.u32 [#allocation6], 4
      %s128 = int_to_ptr.vmem [resolvable:$true] %s127
      %130 = dma.vmem_to_hbm [thread:$0]  %s128, 128, %s5, [#allocation7]
    $region36: #{_waiting_time_impl.1} parent=1 // pred_fallthru
      _
    // Predicated region
    $region37: #{_waiting_time_impl.1} parent=1 // pred_check
      _
    $region38: #{_waiting_time_impl.1} parent=1 // pred_check_branch
      %132 = sbr.rel (0) target = $region40
    $region39: #{_waiting_time_impl.1} parent=1 // pred_region
      %s134 = ssub.s32 32768, 32768
      %135 = vsyncadd [#allocation7], %s134
      %s136 = sshll.u32 [#allocation8], 4
      %s137 = int_to_ptr.vmem [resolvable:$true] %s136
      %142 = dma.vmem_to_hbm [thread:$0]  %s137, 32768, %s6, [#allocation7], 256, 256, 16
    $region40: #{_waiting_time_impl.1} parent=1 // pred_fallthru
      _
    // Predicated region
    $region41: #{_waiting_time_impl.1} parent=1 // pred_check
      _
    $region42: #{_waiting_time_impl.1} parent=1 // pred_check_branch
      %144 = sbr.rel (0) target = $region44
    $region43: #{_waiting_time_impl.1} parent=1 // pred_region
      _
    $region44: #{_waiting_time_impl.1} parent=1 // pred_fallthru
      _
    // Predicated region
    $region45: #{_waiting_time_impl.1} parent=1 // pred_check
      _
    $region46: #{_waiting_time_impl.1} parent=1 // pred_check_branch
      %146 = sbr.rel (0) target = $region48
    $region47: #{_waiting_time_impl.1} parent=1 // pred_region
      %147 = dma.done [#allocation4], 128
    $region48: #{_waiting_time_impl.1} parent=1 // pred_fallthru
      _
    // Predicated region
    $region49: #{_waiting_time_impl.1} parent=1 // pred_check
      _
    $region50: #{_waiting_time_impl.1} parent=1 // pred_check_branch
      %149 = sbr.rel (0) target = $region52
    $region51: #{_waiting_time_impl.1} parent=1 // pred_region
      %150 = dma.done [#allocation7], 128
    $region52: #{_waiting_time_impl.1} parent=1 // pred_fallthru
      _
    // Predicated region
    $region53: #{_waiting_time_impl.1} parent=1 // pred_check
      _
    $region54: #{_waiting_time_impl.1} parent=1 // pred_check_branch
      %152 = sbr.rel (0) target = $region56
    $region55: #{_waiting_time_impl.1} parent=1 // pred_region
      %153 = dma.done [#allocation7], 32768
    $region56: #{_waiting_time_impl.1} parent=1 // pred_fallthru
      _
    %154 = vsyncpa [#allocation3], 1
    %155 = vsyncpa [#allocation4], 1
    %156 = vsyncpa [#allocation7], 1

</llo_original>
